<compile_context>
chip_gen: v7x
topology: tpu7x:2x2x1
jax: 0.10.0
libtpu: 0.0.40
codegen_flags: <defaults>
</compile_context>

<pallas_src>
import functools

import jax
import jax.numpy as jnp
from jax.experimental import pallas as pl
from jax.experimental.pallas import tpu as pltpu


def _vmem_limit_bytes():
    """Generation-aware scoped-VMEM limit (leaves ~25% headroom)."""
    cap = 64 * 1024 * 1024  # conservative default (v7x physical VMEM per core)
    try:
        info = pltpu.get_tpu_info()
        cap = int(getattr(info, "vmem_capacity_bytes", cap) or cap)
    except Exception:
        pass
    return max(32 * 1024 * 1024, min((cap * 3) // 4, 100 * 1024 * 1024))


def _pick_tile(total, target):
    """Largest tile <= target that divides `total` and is a multiple of 8."""
    if total <= target:
        return total
    t = min(target, total)
    t -= t % 8
    for tm in range(t, 7, -8):
        if total % tm == 0:
            return tm
    return total  # full extent is always a valid block (may cost extra VMEM)


# --------------------------------------------------------------------------
# Kernel 1: fused K/V projection, row-tiled over (N*S, E)
# --------------------------------------------------------------------------

def _kv_proj_kernel(*refs, has_pos, compute_dtype):
    it = iter(refs)
    mem_ref = next(it)
    pos_ref = next(it) if has_pos else None
    wk_ref, bk_ref, wv_ref, bv_ref, k_ref, v_ref = (next(it) for _ in range(6))

    mem = mem_ref[...]                                   # (TM, E) f32, read once
    v_in = mem.astype(compute_dtype)
    if has_pos:
        k_in = (mem + pos_ref[...]).astype(compute_dtype)   # fused pos add
    else:
        k_in = v_in
    k_ref[...] = (jnp.dot(k_in, wk_ref[...],
                          preferred_element_type=jnp.float32)
                  + bk_ref[...]).astype(k_ref.dtype)
    v_ref[...] = (jnp.dot(v_in, wv_ref[...],
                          preferred_element_type=jnp.float32)
                  + bv_ref[...]).astype(v_ref.dtype)


def pallas_kv_proj(mem_flat, pos_flat, wk_t, bk, wv_t, bv, *,
                   out_dtype, compute_dtype, row_tile=1024):
    M, E = mem_flat.shape
    tm = _pick_tile(M, row_tile)
    rows = lambda i: (i, 0)
    full = lambda i: (0, 0)
    has_pos = pos_flat is not None

    in_specs = [pl.BlockSpec((tm, E), rows)]
    args = [mem_flat]
    if has_pos:
        in_specs.append(pl.BlockSpec((tm, E), rows))
        args.append(pos_flat)
    in_specs += [pl.BlockSpec((E, E), full), pl.BlockSpec((1, E), full),
                 pl.BlockSpec((E, E), full), pl.BlockSpec((1, E), full)]
    args += [wk_t.astype(compute_dtype), bk.reshape(1, E).astype(jnp.float32),
             wv_t.astype(compute_dtype), bv.reshape(1, E).astype(jnp.float32)]

    kern = functools.partial(_kv_proj_kernel, has_pos=has_pos,
                             compute_dtype=compute_dtype)
    return pl.pallas_call(
        kern,
        out_shape=(jax.ShapeDtypeStruct((M, E), out_dtype),
                   jax.ShapeDtypeStruct((M, E), out_dtype)),
        grid=(M // tm,),
        in_specs=in_specs,
        out_specs=[pl.BlockSpec((tm, E), rows),
                   pl.BlockSpec((tm, E), rows)],
        compiler_params=pltpu.CompilerParams(
            dimension_semantics=("parallel",),
            vmem_limit_bytes=_vmem_limit_bytes()),
    )(*args)


# --------------------------------------------------------------------------
# Kernel 2: fused Q-proj + multi-head attention + out-proj + gating
#           one (batch, q-tile) per grid step; heads handled in-kernel.
# --------------------------------------------------------------------------

def _attn_fused_kernel(*refs, nhead, has_qpos, has_bias, compute_dtype,
                       approx_recip):
    it = iter(refs)
    tgt_ref = next(it)
    qpos_ref = next(it) if has_qpos else None
    k_ref = next(it)
    v_ref = next(it)
    bias_ref = next(it) if has_bias else None
    wq_ref, bq_ref, wo_ref, bo_ref = (next(it) for _ in range(4))
    o_ref = next(it)
    attn_ref = next(it)                                  # VMEM scratch (TL, E) f32

    tgt = tgt_ref[0]                                     # (TL, E) f32
    q_in = tgt + qpos_ref[0] if has_qpos else tgt        # fused query_pos add
    # Softmax scale is pre-folded into Wq^T / bq by the wrapper.
    q = (jnp.dot(q_in.astype(compute_dtype), wq_ref[...],
                 preferred_element_type=jnp.float32) + bq_ref[...])
    q_c = q.astype(compute_dtype)                        # (TL, E)
    k = k_ref[0]                                         # (S, E) compute dtype
    v = v_ref[0]                                         # (S, E) compute dtype

    e = q.shape[-1]
    dh = e // nhead
    contract_last = (((1,), (1,)), ((), ()))             # q_h @ k_h^T without .T

    for h in range(nhead):                               # static head loop
        sl = slice(h * dh, (h + 1) * dh)
        s = jax.lax.dot_general(q_c[:, sl], k[:, sl], contract_last,
                                preferred_element_type=jnp.float32)
        if has_bias:
            s = s + bias_ref[0]                          # (1, S) additive mask
        m = jnp.max(s, axis=-1, keepdims=True)
        p = jnp.exp(s - m)
        denom = jnp.sum(p, axis=-1, keepdims=True)
        o_h = jnp.dot(p.astype(compute_dtype), v[:, sl],
                      preferred_element_type=jnp.float32)
        # Normalize AFTER P@V: (TL, dh) multiply instead of (TL, S).
        attn_ref[:, sl] = o_h * pl.reciprocal(denom, approx=approx_recip)

    y = (jnp.dot(attn_ref[...].astype(compute_dtype), wo_ref[...],
                 preferred_element_type=jnp.float32) + bo_ref[...])
    o_ref[0] = (tgt * y).astype(o_ref.dtype)             # fused gating tgt * tgt2


def pallas_attn_fused(tgt_b, qpos_b, k_b, v_b, bias, wq_t_scaled, bq_scaled,
                      wo_t, bo, nhead, *, compute_dtype, q_tile=256):
    N, L, E = tgt_b.shape
    S = k_b.shape[1]
    tl = _pick_tile(L, q_tile)
    has_qpos = qpos_b is not None
    has_bias = bias is not None

    per_bs = lambda n, l: (n, l, 0)
    per_b = lambda n, l: (n, 0, 0)
    full2 = lambda n, l: (0, 0)

    in_specs = [pl.BlockSpec((1, tl, E), per_bs)]        # tgt
    args = [tgt_b]
    if has_qpos:
        in_specs.append(pl.BlockSpec((1, tl, E), per_bs))
        args.append(qpos_b)
    in_specs += [pl.BlockSpec((1, S, E), per_b),         # k
                 pl.BlockSpec((1, S, E), per_b)]         # v
    args += [k_b, v_b]
    if has_bias:
        in_specs.append(pl.BlockSpec((1, 1, S), per_b))  # key-padding bias
        args.append(bias)
    in_specs += [pl.BlockSpec((E, E), full2),            # Wq^T (pre-scaled)
                 pl.BlockSpec((1, E), full2),            # bq   (pre-scaled)
                 pl.BlockSpec((E, E), full2),            # Wo^T
                 pl.BlockSpec((1, E), full2)]            # bo
    args += [wq_t_scaled.astype(compute_dtype),
             bq_scaled.reshape(1, E).astype(jnp.float32),
             wo_t.astype(compute_dtype),
             bo.reshape(1, E).astype(jnp.float32)]

    kern = functools.partial(_attn_fused_kernel, nhead=nhead,
                             has_qpos=has_qpos, has_bias=has_bias,
                             compute_dtype=compute_dtype,
                             approx_recip=(compute_dtype == jnp.bfloat16))
    return pl.pallas_call(
        kern,
        out_shape=jax.ShapeDtypeStruct((N, L, E), tgt_b.dtype),
        grid=(N, L // tl),
        in_specs=in_specs,
        out_specs=pl.BlockSpec((1, tl, E), per_bs),
        scratch_shapes=[pltpu.VMEM((tl, E), jnp.float32)],
        compiler_params=pltpu.CompilerParams(
            dimension_semantics=("parallel", "parallel"),
            vmem_limit_bytes=_vmem_limit_bytes()),
    )(*args)


# --------------------------------------------------------------------------
# MMF forward (thin JAX glue; all matmuls / softmax / gating in Pallas)
# --------------------------------------------------------------------------

def mmf_forward(params, tgt, memory, memory_key_padding_mask=None,
                pos=None, query_pos=None, nhead=4, use_bf16_matmul=True):
    L, N, E = tgt.shape
    S = memory.shape[0]
    assert E % nhead == 0
    dh = E // nhead
    scale = 1.0 / (dh ** 0.5)
    compute_dtype = jnp.bfloat16 if use_bf16_matmul else jnp.float32
    kv_dtype = jnp.bfloat16 if use_bf16_matmul else memory.dtype

    in_w = params["in_proj_weight"]   # (3E, E)
    in_b = params["in_proj_bias"]     # (3E,)
    wo = params["out_proj_weight"]    # (E, E)
    bo = params["out_proj_bias"]      # (E,)

    wq, wk, wv = in_w[:E], in_w[E:2 * E], in_w[2 * E:]
    bq, bk, bv = in_b[:E], in_b[E:2 * E], in_b[2 * E:]

    # Batch-major layout (N, seq, E): E stays dense on the lane axis in every
    # kernel; one transpose per tensor, pos adds are fused inside the kernels.
    tgt_b = jnp.transpose(tgt, (1, 0, 2))                       # (N, L, E)
    qpos_b = None if query_pos is None else jnp.transpose(query_pos, (1, 0, 2))
    mem_b = jnp.transpose(memory, (1, 0, 2))                    # (N, S, E)
    pos_b = None if pos is None else jnp.transpose(pos, (1, 0, 2))

    mem_flat = mem_b.reshape(N * S, E)
    pos_flat = None if pos_b is None else pos_b.reshape(N * S, E)

    # Fused K/V projection (memory read once per row tile; no zero streams).
    k_flat, v_flat = pallas_kv_proj(mem_flat, pos_flat, wk.T, bk, wv.T, bv,
                                    out_dtype=kv_dtype,
                                    compute_dtype=compute_dtype)
    k_b = k_flat.reshape(N, S, E)
    v_b = v_flat.reshape(N, S, E)

    # Additive key-padding bias per batch (no per-head materialization).
    # Finite -1e30: fully-masked rows give a uniform average (not NaN).
    if memory_key_padding_mask is None:
        bias = None
    else:
        bias = jnp.where(memory_key_padding_mask, -1e30, 0.0
                         ).astype(jnp.float32)[:, None, :]

    # Fold the softmax scale into the Q projection (one-time wrapper op).
    out_b = pallas_attn_fused(tgt_b, qpos_b, k_b, v_b, bias,
                              wq.T * scale, bq * scale, wo.T, bo, nhead,
                              compute_dtype=compute_dtype)
    return jnp.transpose(out_b, (1, 0, 2))                      # (L, N, E)


# Pure-JAX reference for correctness checking.
def mmf_reference(params, tgt, memory, mask, pos, query_pos, nhead):
    L, N, E = tgt.shape
    S = memory.shape[0]
    H, Dh = nhead, E // nhead
    in_w, in_b = params["in_proj_weight"], params["in_proj_bias"]
    wo, bo = params["out_proj_weight"], params["out_proj_bias"]
    q_in = tgt if query_pos is None else tgt + query_pos
    k_in = memory if pos is None else memory + pos
    qp = q_in @ in_w[:E].T + in_b[:E]
    kp = k_in @ in_w[E:2 * E].T + in_b[E:2 * E]
    vp = memory @ in_w[2 * E:].T + in_b[2 * E:]
    sh = lambda x, s: x.reshape(s, N, H, Dh).transpose(1, 2, 0, 3)
    qh, kh, vh = sh(qp, L), sh(kp, S), sh(vp, S)       # (N, H, seq, Dh)
    logits = jnp.einsum("nhld,nhsd->nhls", qh, kh) / (Dh ** 0.5)
    if mask is not None:
        logits = logits + jnp.where(mask, -1e30, 0.0)[:, None, None, :]
    p = jax.nn.softmax(logits, axis=-1)
    oh = jnp.einsum("nhls,nhsd->nhld", p, vh)          # (N, H, L, Dh)
    attn = oh.transpose(2, 0, 1, 3).reshape(L, N, E)
    tgt2 = attn @ wo.T + bo
    return tgt * tgt2


if __name__ == "__main__":
    # Small shapes: d_model=32, nhead=4, tgt len L=8, memory len S=16, batch N=2.
    L, S, N, E, H = 8, 16, 2, 32, 4

    key = jax.random.PRNGKey(0)
    ks = jax.random.split(key, 9)
    params = {
        "in_proj_weight": 0.1 * jax.random.normal(ks[0], (3 * E, E), jnp.float32),
        "in_proj_bias":   0.1 * jax.random.normal(ks[1], (3 * E,), jnp.float32),
        "out_proj_weight": 0.1 * jax.random.normal(ks[2], (E, E), jnp.float32),
        "out_proj_bias":   0.1 * jax.random.normal(ks[3], (E,), jnp.float32),
    }
    tgt = jax.random.normal(ks[4], (L, N, E), jnp.float32)
    memory = jax.random.normal(ks[5], (S, N, E), jnp.float32)
    pos = jax.random.normal(ks[6], (S, N, E), jnp.float32)
    query_pos = jax.random.normal(ks[7], (L, N, E), jnp.float32)
    # key padding mask: True means "ignore this memory position"
    mask = jnp.zeros((N, S), jnp.bool_).at[0, S - 3:].set(True).at[1, S - 1:].set(True)

    # 1) bf16-MXU path with all optional inputs.
    out = mmf_forward(params, tgt, memory, memory_key_padding_mask=mask,
                      pos=pos, query_pos=query_pos, nhead=H, use_bf16_matmul=True)
    out = jax.block_until_ready(out)
    ref = mmf_reference(params, tgt, memory, mask, pos, query_pos, H)
    assert out.shape == (L, N, E)
    assert jnp.allclose(out, ref, atol=5e-2, rtol=5e-2), "bf16 path mismatch"

    # 2) exact-f32 path with all optional inputs.
    out_f32 = mmf_forward(params, tgt, memory, memory_key_padding_mask=mask,
                          pos=pos, query_pos=query_pos, nhead=H,
                          use_bf16_matmul=False)
    out_f32 = jax.block_until_ready(out_f32)
    assert jnp.allclose(out_f32, ref, atol=1e-3, rtol=1e-3), "f32 path mismatch"

    # 3) bf16 path with no pos / query_pos / mask (no zero tensors are DMA'd).
    out_np = mmf_forward(params, tgt, memory, nhead=H, use_bf16_matmul=True)
    out_np = jax.block_until_ready(out_np)
    ref_np = mmf_reference(params, tgt, memory, None, None, None, H)
    assert jnp.allclose(out_np, ref_np, atol=5e-2, rtol=5e-2), "no-optional mismatch"

    print("KERNEL_OK")
</pallas_src>

<mosaic_0001>
module attributes {stable_mosaic.version = 11 : i64} {
  func.func @_kv_proj_kernel(%arg0: i32, %arg1: memref<32x32xf32, #tpu.memory_space<vmem>>, %arg2: memref<32x32xf32, #tpu.memory_space<vmem>>, %arg3: memref<32x32xbf16, #tpu.memory_space<vmem>>, %arg4: memref<1x32xf32, #tpu.memory_space<vmem>>, %arg5: memref<32x32xbf16, #tpu.memory_space<vmem>>, %arg6: memref<1x32xf32, #tpu.memory_space<vmem>>, %arg7: memref<32x32xbf16, #tpu.memory_space<vmem>>, %arg8: memref<32x32xbf16, #tpu.memory_space<vmem>>) attributes {dimension_semantics = [#tpu.dimension_semantics<parallel>], iteration_bounds = array<i64: 1>, scalar_prefetch = 0 : i64, scratch_operands = 0 : i64, tpu.core_type = #tpu.core_type<tc>, window_params = [{transform_indices = @transform_0, window_bounds = array<i64: 32, 32>}, {transform_indices = @transform_1, window_bounds = array<i64: 32, 32>}, {pipeline_mode = #tpu.pipeline_mode<synchronous>, transform_indices = @transform_2, window_bounds = array<i64: 32, 32>}, {pipeline_mode = #tpu.pipeline_mode<synchronous>, transform_indices = @transform_3, window_bounds = array<i64: 1, 32>}, {pipeline_mode = #tpu.pipeline_mode<synchronous>, transform_indices = @transform_4, window_bounds = array<i64: 32, 32>}, {pipeline_mode = #tpu.pipeline_mode<synchronous>, transform_indices = @transform_5, window_bounds = array<i64: 1, 32>}, {transform_indices = @transform_6, window_bounds = array<i64: 32, 32>}, {transform_indices = @transform_7, window_bounds = array<i64: 32, 32>}]} {
    %c0 = arith.constant 0 : index
    %c0_0 = arith.constant 0 : index
    %0 = vector.load %arg1[%c0, %c0_0] : memref<32x32xf32, #tpu.memory_space<vmem>>, vector<32x32xf32>
    %1 = arith.truncf %0 : vector<32x32xf32> to vector<32x32xbf16>
    %c0_1 = arith.constant 0 : index
    %c0_2 = arith.constant 0 : index
    %2 = vector.load %arg2[%c0_1, %c0_2] : memref<32x32xf32, #tpu.memory_space<vmem>>, vector<32x32xf32>
    %3 = arith.addf %0, %2 : vector<32x32xf32>
    %4 = arith.truncf %3 : vector<32x32xf32> to vector<32x32xbf16>
    %c0_3 = arith.constant 0 : index
    %c0_4 = arith.constant 0 : index
    %5 = vector.load %arg3[%c0_3, %c0_4] : memref<32x32xbf16, #tpu.memory_space<vmem>>, vector<32x32xbf16>
    %cst = arith.constant dense<0.000000e+00> : vector<32x32xf32>
    %6 = tpu.matmul %4, %5, %cst {dimension_numbers = #tpu.dot_dimension_numbers<[1], [0], [0], [1], [0, 0, 1, 1], [], []>} : vector<32x32xbf16>, vector<32x32xbf16>, vector<32x32xf32> -> vector<32x32xf32>
    %c0_5 = arith.constant 0 : index
    %c0_6 = arith.constant 0 : index
    %7 = vector.load %arg4[%c0_5, %c0_6] : memref<1x32xf32, #tpu.memory_space<vmem>>, vector<1x32xf32>
    %8 = vector.broadcast %7 : vector<1x32xf32> to vector<32x32xf32>
    %9 = arith.addf %6, %8 : vector<32x32xf32>
    %10 = arith.truncf %9 : vector<32x32xf32> to vector<32x32xbf16>
    %c0_7 = arith.constant 0 : index
    %c0_8 = arith.constant 0 : index
    %11 = vector.load %arg7[%c0_7, %c0_8] : memref<32x32xbf16, #tpu.memory_space<vmem>>, vector<32x32xbf16>
    tpu.vector_store %arg7[%c0_7, %c0_8], %10 {strides = array<i32>} : memref<32x32xbf16, #tpu.memory_space<vmem>>, vector<32x32xbf16>,
    %c0_9 = arith.constant 0 : index
    %c0_10 = arith.constant 0 : index
    %12 = vector.load %arg5[%c0_9, %c0_10] : memref<32x32xbf16, #tpu.memory_space<vmem>>, vector<32x32xbf16>
    %cst_11 = arith.constant dense<0.000000e+00> : vector<32x32xf32>
    %13 = tpu.matmul %1, %12, %cst_11 {dimension_numbers = #tpu.dot_dimension_numbers<[1], [0], [0], [1], [0, 0, 1, 1], [], []>} : vector<32x32xbf16>, vector<32x32xbf16>, vector<32x32xf32> -> vector<32x32xf32>
    %c0_12 = arith.constant 0 : index
    %c0_13 = arith.constant 0 : index
    %14 = vector.load %arg6[%c0_12, %c0_13] : memref<1x32xf32, #tpu.memory_space<vmem>>, vector<1x32xf32>
    %15 = vector.broadcast %14 : vector<1x32xf32> to vector<32x32xf32>
    %16 = arith.addf %13, %15 : vector<32x32xf32>
    %17 = arith.truncf %16 : vector<32x32xf32> to vector<32x32xbf16>
    %c0_14 = arith.constant 0 : index
    %c0_15 = arith.constant 0 : index
    %18 = vector.load %arg8[%c0_14, %c0_15] : memref<32x32xbf16, #tpu.memory_space<vmem>>, vector<32x32xbf16>
    tpu.vector_store %arg8[%c0_14, %c0_15], %17 {strides = array<i32>} : memref<32x32xbf16, #tpu.memory_space<vmem>>, vector<32x32xbf16>,
    return
  }
  func.func @transform_0(%arg0: i32) -> (i32, i32) {
    %c0_i32 = arith.constant 0 : i32
    %c0_i32_0 = arith.constant 0 : i32
    return %arg0, %c0_i32 : i32, i32
  }
  func.func @transform_1(%arg0: i32) -> (i32, i32) {
    %c0_i32 = arith.constant 0 : i32
    %c0_i32_0 = arith.constant 0 : i32
    return %arg0, %c0_i32 : i32, i32
  }
  func.func @transform_2(%arg0: i32) -> (i32, i32) {
    %c0_i32 = arith.constant 0 : i32
    %c0_i32_0 = arith.constant 0 : i32
    %c0_i32_1 = arith.constant 0 : i32
    return %c0_i32, %c0_i32_0 : i32, i32
  }
  func.func @transform_3(%arg0: i32) -> (i32, i32) {
    %c0_i32 = arith.constant 0 : i32
    %c0_i32_0 = arith.constant 0 : i32
    %c0_i32_1 = arith.constant 0 : i32
    return %c0_i32, %c0_i32_0 : i32, i32
  }
  func.func @transform_4(%arg0: i32) -> (i32, i32) {
    %c0_i32 = arith.constant 0 : i32
    %c0_i32_0 = arith.constant 0 : i32
    %c0_i32_1 = arith.constant 0 : i32
    return %c0_i32, %c0_i32_0 : i32, i32
  }
  func.func @transform_5(%arg0: i32) -> (i32, i32) {
    %c0_i32 = arith.constant 0 : i32
    %c0_i32_0 = arith.constant 0 : i32
    %c0_i32_1 = arith.constant 0 : i32
    return %c0_i32, %c0_i32_0 : i32, i32
  }
  func.func @transform_6(%arg0: i32) -> (i32, i32) {
    %c0_i32 = arith.constant 0 : i32
    %c0_i32_0 = arith.constant 0 : i32
    return %arg0, %c0_i32 : i32, i32
  }
  func.func @transform_7(%arg0: i32) -> (i32, i32) {
    %c0_i32 = arith.constant 0 : i32
    %c0_i32_0 = arith.constant 0 : i32
    return %arg0, %c0_i32 : i32, i32
  }
}

</mosaic_0001>

<llo_original>
// kernel: tpu_custom_call.1
$region0: #{tpu_custom_call.1}
  #allocation0 [shape = 'u32[]', space=smem, size = 0x4, offset = 0x4, fixed_abs, tag = 'smem constant byte address 0x4 - core index']
  #allocation1 [shape = 'u32[144,128]{1,0:T(1,128)}', space=vmem, size = 0x12000, scoped, tag = 'internal scratch']
  %s0 = inlined_call_operand.hbm [shape: f32[32,32], index: 0, kind: input, shape index: {}]
  %s1 = inlined_call_operand.hbm [shape: f32[32,32], index: 1, kind: input, shape index: {}]
  %s2 = inlined_call_operand.hbm [shape: bf16[32,32], index: 2, kind: input, shape index: {}]
  %s3 = inlined_call_operand.vmem [shape: f32[1,32], index: 3, kind: input, shape index: {}]
  %s4 = inlined_call_operand.hbm [shape: bf16[32,32], index: 4, kind: input, shape index: {}]
  %s5 = inlined_call_operand.vmem [shape: f32[1,32], index: 5, kind: input, shape index: {}]
  %s6 = inlined_call_operand.hbm [shape: bf16[32,32], index: 6, kind: output, shape index: {0}]
  %s7 = inlined_call_operand.hbm [shape: bf16[32,32], index: 7, kind: output, shape index: {1}]
  %8 = xla_tuple %s6, %s7
  %s9 = sld [smem:[#allocation0]]
  $region58: #{tpu_custom_call.1} parent=0
    _
  %s11 = ssub.s32 1, %s9
  %s12 = scalar_select 0, %s11, %s9
  $region1: #{tpu_custom_call.1} parent=0
    #allocation2 [shape = 'u8[16384]{0}', space=vmem, size = 0x4000, scoped, tag = 'input window, operand 0, single buffered']
    #allocation3 [shape = 's32[1]{0}', space=sflag, size = 0x4, scoped, tag = 'scoped memory for tpu_custom_call.1']
    #allocation4 [shape = 's32[1]{0}', space=sflag, size = 0x4, scoped, tag = 'scoped memory for tpu_custom_call.1']
    #allocation5 [shape = 'u8[16384]{0}', space=vmem, size = 0x4000, scoped, tag = 'input window, operand 1, single buffered']
    #allocation6 [shape = 's32[1]{0}', space=sflag, size = 0x4, scoped, tag = 'scoped memory for tpu_custom_call.1']
    #allocation7 [shape = 'u8[8192]{0}', space=vmem, size = 0x2000, scoped, tag = 'input window, operand 2, single buffered']
    #allocation8 [shape = 'u8[8192]{0}', space=vmem, size = 0x2000, scoped, tag = 'input window, operand 4, single buffered']
    #allocation9 [shape = 's32[1]{0}', space=sflag, size = 0x4, scoped, tag = 'scoped memory for tpu_custom_call.1']
    #allocation10 [shape = 'u8[8192]{0}', space=vmem, size = 0x2000, scoped, tag = 'output window, operand 0, single buffered']
    #allocation11 [shape = 'u8[8192]{0}', space=vmem, size = 0x2000, scoped, tag = 'output window, operand 1, single buffered']
    #allocation12 [shape = 's32[1]{0}', space=sflag, size = 0x4, scoped, tag = 'scoped memory for tpu_custom_call.1']
    %13 = vsyncpa [#allocation3], 0
    %14 = vsyncpa [#allocation6], 0
    %15 = vsyncpa [#allocation9], 0
    %16 = vsyncpa [#allocation4], 0
    %17 = vsyncpa [#allocation12], 0
    // Predicated region
    $region2: #{tpu_custom_call.1} parent=1 // pred_check
      _
    $region3: #{tpu_custom_call.1} parent=1 // pred_check_branch
      %19 = sbr.rel (0) target = $region5
    $region4: #{tpu_custom_call.1} parent=1 // pred_region
      %s21 = ssub.s32 512, 512
      %22 = vsyncadd [#allocation3], %s21
      %s23 = sshll.u32 [#allocation2], 4
      %s24 = int_to_ptr.vmem [resolvable:$true] %s23
      %29 = dma.hbm_to_vmem [thread:$0]  %s0, 512, %s24, [#allocation3], 128, 128, 8
    $region5: #{tpu_custom_call.1} parent=1 // pred_fallthru
      _
    // Predicated region
    $region6: #{tpu_custom_call.1} parent=1 // pred_check
      _
    $region7: #{tpu_custom_call.1} parent=1 // pred_check_branch
      %31 = sbr.rel (0) target = $region9
    $region8: #{tpu_custom_call.1} parent=1 // pred_region
      %s33 = ssub.s32 512, 512
      %34 = vsyncadd [#allocation6], %s33
      %s35 = sshll.u32 [#allocation5], 4
      %s36 = int_to_ptr.vmem [resolvable:$true] %s35
      %41 = dma.hbm_to_vmem [thread:$0]  %s1, 512, %s36, [#allocation6], 128, 128, 8
    $region9: #{tpu_custom_call.1} parent=1 // pred_fallthru
      _
    // Predicated region
    $region10: #{tpu_custom_call.1} parent=1 // pred_check
      _
    $region11: #{tpu_custom_call.1} parent=1 // pred_check_branch
      %43 = sbr.rel (0) target = $region13
    $region12: #{tpu_custom_call.1} parent=1 // pred_region
      %s45 = ssub.s32 256, 256
      %46 = vsyncadd [#allocation6], %s45
      %s47 = sshll.u32 [#allocation7], 4
      %s48 = int_to_ptr.vmem [resolvable:$true] %s47
      %53 = dma.hbm_to_vmem [thread:$0]  %s2, 256, %s48, [#allocation6], 64, 64, 4
    $region13: #{tpu_custom_call.1} parent=1 // pred_fallthru
      _
    // Predicated region
    $region14: #{tpu_custom_call.1} parent=1 // pred_check
      _
    $region15: #{tpu_custom_call.1} parent=1 // pred_check_branch
      %55 = sbr.rel (0) target = $region17
    $region16: #{tpu_custom_call.1} parent=1 // pred_region
      _
    $region17: #{tpu_custom_call.1} parent=1 // pred_fallthru
      _
    // Predicated region
    $region18: #{tpu_custom_call.1} parent=1 // pred_check
      _
    $region19: #{tpu_custom_call.1} parent=1 // pred_check_branch
      %57 = sbr.rel (0) target = $region21
    $region20: #{tpu_custom_call.1} parent=1 // pred_region
      %s59 = ssub.s32 256, 256
      %60 = vsyncadd [#allocation9], %s59
      %s61 = sshll.u32 [#allocation8], 4
      %s62 = int_to_ptr.vmem [resolvable:$true] %s61
      %67 = dma.hbm_to_vmem [thread:$0]  %s4, 256, %s62, [#allocation9], 64, 64, 4
    $region21: #{tpu_custom_call.1} parent=1 // pred_fallthru
      _
    // Predicated region
    $region22: #{tpu_custom_call.1} parent=1 // pred_check
      _
    $region23: #{tpu_custom_call.1} parent=1 // pred_check_branch
      %69 = sbr.rel (0) target = $region25
    $region24: #{tpu_custom_call.1} parent=1 // pred_region
      _
    $region25: #{tpu_custom_call.1} parent=1 // pred_fallthru
      _
    // Predicated region
    $region26: #{tpu_custom_call.1} parent=1 // pred_check
      _
    $region27: #{tpu_custom_call.1} parent=1 // pred_check_branch
      %71 = sbr.rel (0) target = $region29
    $region28: #{tpu_custom_call.1} parent=1 // pred_region
      %72 = dma.done [#allocation3], 512
    $region29: #{tpu_custom_call.1} parent=1 // pred_fallthru
      _
    // Predicated region
    $region30: #{tpu_custom_call.1} parent=1 // pred_check
      _
    $region31: #{tpu_custom_call.1} parent=1 // pred_check_branch
      %74 = sbr.rel (0) target = $region33
    $region32: #{tpu_custom_call.1} parent=1 // pred_region
      %75 = dma.done [#allocation6], 512
    $region33: #{tpu_custom_call.1} parent=1 // pred_fallthru
      _
    // Predicated region
    $region34: #{tpu_custom_call.1} parent=1 // pred_check
      _
    $region35: #{tpu_custom_call.1} parent=1 // pred_check_branch
      %77 = sbr.rel (0) target = $region37
    $region36: #{tpu_custom_call.1} parent=1 // pred_region
      %78 = dma.done [#allocation6], 256
    $region37: #{tpu_custom_call.1} parent=1 // pred_fallthru
      _
    // Predicated region
    $region38: #{tpu_custom_call.1} parent=1 // pred_check
      _
    $region39: #{tpu_custom_call.1} parent=1 // pred_check_branch
      %80 = sbr.rel (0) target = $region41
    $region40: #{tpu_custom_call.1} parent=1 // pred_region
      %81 = dma.done [#allocation9], 256
    $region41: #{tpu_custom_call.1} parent=1 // pred_fallthru
      _
    %v83 = vld [vmem:[#allocation2] sm:$0xff]
    %v84 = vld [vmem:[#allocation2 + $0x8] sm:$0xff]
    %v85 = vld [vmem:[#allocation2 + $0x10] sm:$0xff]
    %v86 = vld [vmem:[#allocation2 + $0x18] sm:$0xff]
    %v87 = vpack.c.bf16 %v84, %v83
    %v88 = vpack.c.bf16 %v86, %v85
    %v89 = vld [vmem:[#allocation5] sm:$0xff]
    %v90 = vld [vmem:[#allocation5 + $0x8] sm:$0xff]
    %v91 = vld [vmem:[#allocation5 + $0x10] sm:$0xff]
    %v92 = vld [vmem:[#allocation5 + $0x18] sm:$0xff]
    %v93 = vadd.f32 %v83, %v89
    %v94 = vadd.f32 %v84, %v90
    %v95 = vadd.f32 %v85, %v91
    %v96 = vadd.f32 %v86, %v92
    %v97 = vpack.c.bf16 %v94, %v93
    %v98 = vpack.c.bf16 %v96, %v95
    %v99 = vld [vmem:[#allocation7] sm:$0xf]
    %v100 = vld [vmem:[#allocation7 + $0x4] sm:$0xf]
    %v101 = vld [vmem:[#allocation7 + $0x8] sm:$0xf]
    %v102 = vld [vmem:[#allocation7 + $0xc] sm:$0xf]
    %v103 = vld [vmem:[%s3] sm:$0x1]
    %v105 = vlaneseq
    %v106 = vshrl.u32 %v105, 7
    %v107 = vsub.s32 0, %v106
    %v108 = vrot.slane %v103, %v107
    %v114 = vunpack.c.l.b16 %v99
    %v115 = vunpack.c.l.b16 %v100
    %v116 = vunpack.c.l.b16 %v101
    %v117 = vunpack.c.l.b16 %v102
    %v118 = vpack.c.b16 %v115, %v114
    %v119 = vpack.c.b16 %v117, %v116
    %vm122 = vcmask 261120
    %v124 = vsel %vm122, %v97, 0
    %v127 = vsel %vm122, %v98, 0
    %129 = vmatprep.subr.bf16.mxu0 0
    %130 = vmatpush1.bf16.msra.mxu0 %v118
    %131 = vmatprep.subr.bf16.mxu0 0
    %132 = vmatpush1.bf16.msra.mxu0 %v119
    %133 = vmatprep.subr.bf16.mxu0 0
    %134 = vmatpush1.bf16.msra.mxu0 0
    %135 = vmatprep.subr.bf16.mxu0 0
    %136 = vmatpush1.bf16.msra.mxu0 0
    %137 = vmatprep.subr.bf16.mxu0 0
    %138 = vmatpush1.bf16.msra.mxu0 0
    %139 = vmatprep.subr.bf16.mxu0 0
    %140 = vmatpush1.bf16.msra.mxu0 0
    %141 = vmatprep.subr.bf16.mxu0 0
    %142 = vmatpush1.bf16.msra.mxu0 0
    %143 = vmatprep.subr.bf16.mxu0 0
    %144 = vmatpush1.bf16.msra.mxu0 0
    %145 = vmatprep.subr.bf16.mxu0 0
    %146 = vmatpush1.bf16.msra.mxu0 0
    %147 = vmatprep.subr.bf16.mxu0 0
    %148 = vmatpush1.bf16.msra.mxu0 0
    %149 = vmatprep.subr.bf16.mxu0 0
    %150 = vmatpush1.bf16.msra.mxu0 0
    %151 = vmatprep.subr.bf16.mxu0 0
    %152 = vmatpush1.bf16.msra.mxu0 0
    %153 = vmatprep.subr.bf16.mxu0 0
    %154 = vmatpush1.bf16.msra.mxu0 0
    %155 = vmatprep.subr.bf16.mxu0 0
    %156 = vmatpush1.bf16.msra.mxu0 0
    %157 = vmatprep.subr.bf16.mxu0 0
    %158 = vmatpush1.bf16.msra.mxu0 0
    %159 = vmatprep.subr.bf16.mxu0 0
    %160 = vmatpush1.bf16.msra.mxu0 0
    %161 = vmatprep.mubr.bf16.mxu0 0
    %162 = vmatmul.mubr.bf16.gmra.mrb[0].mxu0 %v124
    %v163 = vpop.f32.mrb[0].mxu0
    %v164 = vadd.f32 %v108, %v163
    %v165 = vpop.f32.mrb[0].mxu0
    %v166 = vpop.f32.mrb[0].mxu0
    %v167 = vadd.f32 %v108, %v166
    %v168 = vpop.f32.mrb[0].mxu0
    %169 = vmatprep.mubr.bf16.mxu0 0
    %170 = vmatmul.mubr.bf16.gmra.mrb[0].mxu0 %v127
    %v171 = vpop.f32.mrb[0].mxu0
    %v172 = vadd.f32 %v108, %v171
    %v173 = vpop.f32.mrb[0].mxu0
    %v174 = vpop.f32.mrb[0].mxu0
    %v175 = vadd.f32 %v108, %v174
    %v176 = vpop.f32.mrb[0].mxu0
    %177 = vdwg.mxu0
    %v178 = vpack.c.bf16 %v167, %v164
    %v179 = vpack.c.bf16 %v175, %v172
    %v182 = vunpack.c.l.b16 %v178
    %v183 = vunpack.c.h.b16 %v178
    %v184 = vunpack.c.l.b16 %v179
    %v185 = vunpack.c.h.b16 %v179
    %v186 = vpack.c.b16 %v182, %v182
    %v187 = vpack.c.b16 %v183, %v183
    %v188 = vpack.c.b16 %v184, %v184
    %v189 = vpack.c.b16 %v185, %v185
    %vm194 = vcmask 257024
    %195 = vst.msk [vmem:[#allocation10] sm:$0xf] %vm194, %v186
    %196 = vst.msk [vmem:[#allocation10 + $0x4] sm:$0xf] %vm194, %v187
    %197 = vst.msk [vmem:[#allocation10 + $0x8] sm:$0xf] %vm194, %v188
    %198 = vst.msk [vmem:[#allocation10 + $0xc] sm:$0xf] %vm194, %v189
    %v199 = vld [vmem:[#allocation8] sm:$0xf]
    %v200 = vld [vmem:[#allocation8 + $0x4] sm:$0xf]
    %v201 = vld [vmem:[#allocation8 + $0x8] sm:$0xf]
    %v202 = vld [vmem:[#allocation8 + $0xc] sm:$0xf]
    %v203 = vld [vmem:[%s5] sm:$0x1]
    %v205 = vlaneseq
    %v206 = vshrl.u32 %v205, 7
    %v207 = vsub.s32 0, %v206
    %v208 = vrot.slane %v203, %v207
    %v214 = vunpack.c.l.b16 %v199
    %v215 = vunpack.c.l.b16 %v200
    %v216 = vunpack.c.l.b16 %v201
    %v217 = vunpack.c.l.b16 %v202
    %v218 = vpack.c.b16 %v215, %v214
    %v219 = vpack.c.b16 %v217, %v216
    %v223 = vsel %vm122, %v87, 0
    %v226 = vsel %vm122, %v88, 0
    %228 = vmatprep.subr.bf16.mxu0 0
    %229 = vmatpush1.bf16.msra.mxu0 %v218
    %230 = vmatprep.subr.bf16.mxu0 0
    %231 = vmatpush1.bf16.msra.mxu0 %v219
    %232 = vmatprep.subr.bf16.mxu0 0
    %233 = vmatpush1.bf16.msra.mxu0 0
    %234 = vmatprep.subr.bf16.mxu0 0
    %235 = vmatpush1.bf16.msra.mxu0 0
    %236 = vmatprep.subr.bf16.mxu0 0
    %237 = vmatpush1.bf16.msra.mxu0 0
    %238 = vmatprep.subr.bf16.mxu0 0
    %239 = vmatpush1.bf16.msra.mxu0 0
    %240 = vmatprep.subr.bf16.mxu0 0
    %241 = vmatpush1.bf16.msra.mxu0 0
    %242 = vmatprep.subr.bf16.mxu0 0
    %243 = vmatpush1.bf16.msra.mxu0 0
    %244 = vmatprep.subr.bf16.mxu0 0
    %245 = vmatpush1.bf16.msra.mxu0 0
    %246 = vmatprep.subr.bf16.mxu0 0
    %247 = vmatpush1.bf16.msra.mxu0 0
    %248 = vmatprep.subr.bf16.mxu0 0
    %249 = vmatpush1.bf16.msra.mxu0 0
    %250 = vmatprep.subr.bf16.mxu0 0
    %251 = vmatpush1.bf16.msra.mxu0 0
    %252 = vmatprep.subr.bf16.mxu0 0
    %253 = vmatpush1.bf16.msra.mxu0 0
    %254 = vmatprep.subr.bf16.mxu0 0
    %255 = vmatpush1.bf16.msra.mxu0 0
    %256 = vmatprep.subr.bf16.mxu0 0
    %257 = vmatpush1.bf16.msra.mxu0 0
    %258 = vmatprep.subr.bf16.mxu0 0
    %259 = vmatpush1.bf16.msra.mxu0 0
    %260 = vmatprep.mubr.bf16.mxu0 0
    %261 = vmatmul.mubr.bf16.gmra.mrb[0].mxu0 %v223
    %v262 = vpop.f32.mrb[0].mxu0
    %v263 = vadd.f32 %v208, %v262
    %v264 = vpop.f32.mrb[0].mxu0
    %v265 = vpop.f32.mrb[0].mxu0
    %v266 = vadd.f32 %v208, %v265
    %v267 = vpop.f32.mrb[0].mxu0
    %268 = vmatprep.mubr.bf16.mxu0 0
    %269 = vmatmul.mubr.bf16.gmra.mrb[0].mxu0 %v226
    %v270 = vpop.f32.mrb[0].mxu0
    %v271 = vadd.f32 %v208, %v270
    %v272 = vpop.f32.mrb[0].mxu0
    %v273 = vpop.f32.mrb[0].mxu0
    %v274 = vadd.f32 %v208, %v273
    %v275 = vpop.f32.mrb[0].mxu0
    %276 = vdwg.mxu0
    %v277 = vpack.c.bf16 %v266, %v263
    %v278 = vpack.c.bf16 %v274, %v271
    %v281 = vunpack.c.l.b16 %v277
    %v282 = vunpack.c.h.b16 %v277
    %v283 = vunpack.c.l.b16 %v278
    %v284 = vunpack.c.h.b16 %v278
    %v285 = vpack.c.b16 %v281, %v281
    %v286 = vpack.c.b16 %v282, %v282
    %v287 = vpack.c.b16 %v283, %v283
    %v288 = vpack.c.b16 %v284, %v284
    %293 = vst.msk [vmem:[#allocation11] sm:$0xf] %vm194, %v285
    %294 = vst.msk [vmem:[#allocation11 + $0x4] sm:$0xf] %vm194, %v286
    %295 = vst.msk [vmem:[#allocation11 + $0x8] sm:$0xf] %vm194, %v287
    %296 = vst.msk [vmem:[#allocation11 + $0xc] sm:$0xf] %vm194, %v288
    // Predicated region
    $region42: #{tpu_custom_call.1} parent=1 // pred_check
      _
    $region43: #{tpu_custom_call.1} parent=1 // pred_check_branch
      %298 = sbr.rel (0) target = $region45
    $region44: #{tpu_custom_call.1} parent=1 // pred_region
      %s300 = ssub.s32 256, 256
      %301 = vsyncadd [#allocation4], %s300
      %s302 = sshll.u32 [#allocation10], 4
      %s303 = int_to_ptr.vmem [resolvable:$true] %s302
      %308 = dma.vmem_to_hbm [thread:$0]  %s303, 256, %s6, [#allocation4], 64, 64, 4
    $region45: #{tpu_custom_call.1} parent=1 // pred_fallthru
      _
    // Predicated region
    $region46: #{tpu_custom_call.1} parent=1 // pred_check
      _
    $region47: #{tpu_custom_call.1} parent=1 // pred_check_branch
      %310 = sbr.rel (0) target = $region49
    $region48: #{tpu_custom_call.1} parent=1 // pred_region
      %s312 = ssub.s32 256, 256
      %313 = vsyncadd [#allocation12], %s312
      %s314 = sshll.u32 [#allocation11], 4
      %s315 = int_to_ptr.vmem [resolvable:$true] %s314
      %320 = dma.vmem_to_hbm [thread:$0]  %s315, 256, %s7, [#allocation12], 64, 64, 4
    $region49: #{tpu_custom_call.1} parent=1 // pred_fallthru
      _
    // Predicated region
    $region50: #{tpu_custom_call.1} parent=1 // pred_check
      _
    $region51: #{tpu_custom_call.1} parent=1 // pred_check_branch
      %322 = sbr.rel (0) target = $region53
    $region52: #{tpu_custom_call.1} parent=1 // pred_region
      %323 = dma.done [#allocation4], 256
    $region53: #{tpu_custom_call.1} parent=1 // pred_fallthru
      _
    // Predicated region
    $region54: #{tpu_custom_call.1} parent=1 // pred_check
      _
    $region55: #{tpu_custom_call.1} parent=1 // pred_check_branch
      %325 = sbr.rel (0) target = $region57
    $region56: #{tpu_custom_call.1} parent=1 // pred_region
      %326 = dma.done [#allocation12], 256
    $region57: #{tpu_custom_call.1} parent=1 // pred_fallthru
      _
    %327 = vsyncpa [#allocation3], 1
    %328 = vsyncpa [#allocation6], 1
    %329 = vsyncpa [#allocation9], 1
    %330 = vsyncpa [#allocation4], 1
    %331 = vsyncpa [#allocation12], 1

</llo_original>
